<compile_context>
chip_gen: v7x
topology: tpu7x:2x2x1
jax: 0.10.0
libtpu: 0.0.40
codegen_flags: <defaults>
</compile_context>

<pallas_src>
import jax
import jax.numpy as jnp
from jax.experimental import pallas as pl
from jax.experimental.pallas import tpu as pltpu

ALPHA = 0.5
BETA = 0.5
SMOOTH = 1e-5
IGNORE_INDEX = 3
LANES = 128


def _make_kernel(p_real):
    """Builds the per-(batch, spatial-tile) kernel. p_real = number of real (unpadded) pixels."""

    def kernel(logits_ref, targets_ref, out_ref,
               acc_inter, acc_union, acc_ce, acc_valid):
        num_classes = logits_ref.shape[1]
        ts = logits_ref.shape[2]          # sublane rows per tile
        i = pl.program_id(1)              # spatial-tile (reduction) index

        @pl.when(i == 0)
        def _init():
            acc_inter[...] = jnp.zeros_like(acc_inter)
            acc_union[...] = jnp.zeros_like(acc_union)
            acc_ce[...] = jnp.zeros_like(acc_ce)
            acc_valid[...] = jnp.zeros_like(acc_valid)

        tgt = targets_ref[0]                                        # (TS, 128) int32

        # Tail mask: global flat pixel index < real P (handles wrapper padding).
        sub = jax.lax.broadcasted_iota(jnp.int32, tgt.shape, 0)
        lane = jax.lax.broadcasted_iota(jnp.int32, tgt.shape, 1)
        pos = (i * ts + sub) * LANES + lane
        inb_f = (pos < p_real).astype(jnp.float32)                  # 1.0 real, 0.0 pad

        # Per-class channel slices; C is small & static, so the loop is unrolled and every
        # channel reduction is a plain elementwise op across vregs (VPU only).
        x = [logits_ref[0, c] for c in range(num_classes)]          # each (TS, 128) f32

        m = x[0]
        for c in range(1, num_classes):
            m = jnp.maximum(m, x[c])
        e = [jnp.exp(xc - m) for xc in x]
        se = e[0]
        for c in range(1, num_classes):
            se = se + e[c]
        inv_se = 1.0 / se                                           # exact reciprocal
        log_se = jnp.log(se)

        # --- CrossEntropy(ignore_index) partial sums, no logp materialization ---
        logit_at_tgt = jnp.where(tgt == 0, x[0], 0.0)
        for c in range(1, num_classes):
            logit_at_tgt = logit_at_tgt + jnp.where(tgt == c, x[c], 0.0)
        ce_pp = -(logit_at_tgt - m - log_se)                        # (TS, 128)
        valid = jnp.where(tgt != IGNORE_INDEX, inb_f, 0.0)
        acc_ce[...] += ce_pp * valid
        acc_valid[...] += valid

        # --- Dice partial sums: elementwise accumulate, no reductions in steady state ---
        for c in range(num_classes):
            p_c = e[c] * inv_se
            oh_c = jnp.where(tgt == c, inb_f, 0.0)                  # masked one-hot
            acc_inter[c] += p_c * oh_c
            acc_union[c] += p_c * inb_f + oh_c

        # --- Epilogue: collapse accumulators once, emit per-batch partials ---
        @pl.when(i == pl.num_programs(1) - 1)
        def _fin():
            ce_num = jnp.sum(acc_ce[...])
            n_valid = jnp.sum(acc_valid[...])
            dice_sum = jnp.float32(0.0)
            for c in range(num_classes):
                inter_c = jnp.sum(acc_inter[c])
                union_c = jnp.sum(acc_union[c])
                dice_sum = dice_sum + (2.0 * inter_c + SMOOTH) / (union_c + SMOOTH)
            lane_o = jax.lax.broadcasted_iota(jnp.int32, out_ref.shape, 2)
            out_ref[...] = jnp.where(lane_o == 0, ce_num,
                           jnp.where(lane_o == 1, n_valid,
                           jnp.where(lane_o == 2, dice_sum, 0.0)))

    return kernel


def combined_loss(logits_nchw, targets_nhw, *, tile_sublanes=256,
                  vmem_limit_bytes=32 * 1024 * 1024):
    """logits_nchw: (B, C, H, W) float; targets_nhw: (B, H, W) int in [0, C)."""
    B, C, H, W = logits_nchw.shape
    P = H * W

    # Spatial tiling: each tile is (ts, 128) pixels. ts is a multiple of 8 (or the full extent).
    ns = (P + LANES - 1) // LANES
    if ns <= tile_sublanes:
        ts = ns                                   # single tile along the sublane axis
    else:
        assert tile_sublanes % 8 == 0, "tile_sublanes must be a multiple of 8"
        ts = tile_sublanes
    ns_pad = ((ns + ts - 1) // ts) * ts
    p_pad = ns_pad * LANES
    nt = ns_pad // ts

    logits = logits_nchw.reshape(B, C, P).astype(jnp.float32)
    targets = targets_nhw.reshape(B, P).astype(jnp.int32)
    if p_pad != P:
        logits = jnp.pad(logits, ((0, 0), (0, 0), (0, p_pad - P)))
        targets = jnp.pad(targets, ((0, 0), (0, p_pad - P)), constant_values=IGNORE_INDEX)

    # Lane-major layout: spatial pixels own (sublane, lane); C stays a leading dim.
    logits = logits.reshape(B, C, ns_pad, LANES)
    targets = targets.reshape(B, ns_pad, LANES)

    partials = pl.pallas_call(
        _make_kernel(p_real=P),
        out_shape=jax.ShapeDtypeStruct((B, 1, LANES), jnp.float32),
        grid_spec=pltpu.PrefetchScalarGridSpec(
            num_scalar_prefetch=0,
            grid=(B, nt),                                      # (parallel batch, reduction tiles)
            in_specs=[
                pl.BlockSpec((1, C, ts, LANES), lambda b, i: (b, 0, i, 0)),
                pl.BlockSpec((1, ts, LANES), lambda b, i: (b, i, 0)),
            ],
            out_specs=pl.BlockSpec((1, 1, LANES), lambda b, i: (b, 0, 0)),
            scratch_shapes=[
                pltpu.VMEM((C, ts, LANES), jnp.float32),       # sum probs*onehot  (Dice inter)
                pltpu.VMEM((C, ts, LANES), jnp.float32),       # sum probs+onehot  (Dice union)
                pltpu.VMEM((ts, LANES), jnp.float32),          # sum ce_pp * valid
                pltpu.VMEM((ts, LANES), jnp.float32),          # sum valid
            ],
        ),
        compiler_params=pltpu.CompilerParams(
            dimension_semantics=("parallel", "arbitrary"),
            vmem_limit_bytes=vmem_limit_bytes,
        ),
    )(logits, targets)

    # Tiny final combine (B x 3 scalars) in plain JAX.
    ce_num = jnp.sum(partials[:, 0, 0])
    n_valid = jnp.sum(partials[:, 0, 1])      # NaN if every pixel is ignored (matches PyTorch)
    dice_sum = jnp.sum(partials[:, 0, 2])
    ce = ce_num / n_valid
    dice_loss = 1.0 - dice_sum / (B * C)
    return ALPHA * ce + BETA * dice_loss


def _reference(logits_nchw, targets_nhw):
    """Pure-JAX reference mirroring the PyTorch module, for a correctness check."""
    B, C, H, W = logits_nchw.shape
    logits = logits_nchw.astype(jnp.float32)
    tgt = targets_nhw.astype(jnp.int32)
    logp = jax.nn.log_softmax(logits, axis=1)
    probs = jax.nn.softmax(logits, axis=1)
    onehot = jax.nn.one_hot(tgt, C, dtype=jnp.float32).transpose(0, 3, 1, 2)  # (B,C,H,W)
    valid = (tgt != IGNORE_INDEX).astype(jnp.float32)
    ce_pp = -jnp.sum(onehot * logp, axis=1)
    ce = jnp.sum(ce_pp * valid) / jnp.sum(valid)
    inter = jnp.sum(probs * onehot, axis=(2, 3))
    union = jnp.sum(probs, axis=(2, 3)) + jnp.sum(onehot, axis=(2, 3))
    dice = (2.0 * inter + SMOOTH) / (union + SMOOTH)
    dice_loss = jnp.mean(1.0 - jnp.mean(dice, axis=0))
    return ALPHA * ce + BETA * dice_loss


if __name__ == "__main__":
    key = jax.random.PRNGKey(0)
    k1, k2, k3, k4 = jax.random.split(key, 4)

    # Case 1: multi-tile reduction grid (tile_sublanes=8 -> 4 spatial tiles per batch element).
    B, C, H, W = 2, 4, 64, 64
    logits = jax.random.normal(k1, (B, C, H, W), dtype=jnp.float32)
    targets = jax.random.randint(k2, (B, H, W), minval=0, maxval=C, dtype=jnp.int32)
    out = jax.block_until_ready(combined_loss(logits, targets, tile_sublanes=8))
    ref = _reference(logits, targets)
    assert jnp.allclose(out, ref, rtol=1e-5, atol=1e-5), (out, ref)

    # Case 2: P not a multiple of 128 -> exercises the padded-tail masking path.
    logits2 = jax.random.normal(k3, (2, 4, 10, 10), dtype=jnp.float32)
    targets2 = jax.random.randint(k4, (2, 10, 10), minval=0, maxval=4, dtype=jnp.int32)
    out2 = jax.block_until_ready(combined_loss(logits2, targets2))
    ref2 = _reference(logits2, targets2)
    assert jnp.allclose(out2, ref2, rtol=1e-5, atol=1e-5), (out2, ref2)

    print("KERNEL_OK")
</pallas_src>

<mosaic_0001>
module attributes {stable_mosaic.version = 11 : i64} {
  func.func @kernel(%arg0: i32, %arg1: i32, %arg2: memref<1x4x8x128xf32, #tpu.memory_space<vmem>>, %arg3: memref<1x8x128xi32, #tpu.memory_space<vmem>>, %arg4: memref<1x1x128xf32, #tpu.memory_space<vmem>>, %arg5: memref<4x8x128xf32, #tpu.memory_space<vmem>>, %arg6: memref<4x8x128xf32, #tpu.memory_space<vmem>>, %arg7: memref<8x128xf32, #tpu.memory_space<vmem>>, %arg8: memref<8x128xf32, #tpu.memory_space<vmem>>) attributes {dimension_semantics = [#tpu.dimension_semantics<parallel>, #tpu.dimension_semantics<arbitrary>], iteration_bounds = array<i64: 2, 4>, scalar_prefetch = 0 : i64, scratch_operands = 4 : i64, tpu.core_type = #tpu.core_type<tc>, window_params = [{transform_indices = @transform_0, window_bounds = array<i64: 1, 4, 8, 128>}, {transform_indices = @transform_1, window_bounds = array<i64: 1, 8, 128>}, {transform_indices = @transform_2, window_bounds = array<i64: 1, 1, 128>}]} {
    %c0_i32 = arith.constant 0 : i32
    %0 = arith.cmpi eq, %arg1, %c0_i32 : i32
    %1 = arith.extui %0 : i1 to i32
    %c0_i32_0 = arith.constant 0 : i32
    %2 = arith.cmpi ne, %1, %c0_i32_0 : i32
    scf.if %2 {
      %cst_90 = arith.constant 0.000000e+00 : f32
      %159 = vector.broadcast %cst_90 : f32 to vector<4x8x128xf32>
      %c0_91 = arith.constant 0 : index
      %c0_92 = arith.constant 0 : index
      %c0_93 = arith.constant 0 : index
      %160 = vector.load %arg5[%c0_91, %c0_92, %c0_93] : memref<4x8x128xf32, #tpu.memory_space<vmem>>, vector<4x8x128xf32>
      tpu.vector_store %arg5[%c0_91, %c0_92, %c0_93], %159 {strides = array<i32>} : memref<4x8x128xf32, #tpu.memory_space<vmem>>, vector<4x8x128xf32>,
      %cst_94 = arith.constant 0.000000e+00 : f32
      %161 = vector.broadcast %cst_94 : f32 to vector<4x8x128xf32>
      %c0_95 = arith.constant 0 : index
      %c0_96 = arith.constant 0 : index
      %c0_97 = arith.constant 0 : index
      %162 = vector.load %arg6[%c0_95, %c0_96, %c0_97] : memref<4x8x128xf32, #tpu.memory_space<vmem>>, vector<4x8x128xf32>
      tpu.vector_store %arg6[%c0_95, %c0_96, %c0_97], %161 {strides = array<i32>} : memref<4x8x128xf32, #tpu.memory_space<vmem>>, vector<4x8x128xf32>,
      %cst_98 = arith.constant 0.000000e+00 : f32
      %163 = vector.broadcast %cst_98 : f32 to vector<8x128xf32>
      %c0_99 = arith.constant 0 : index
      %c0_100 = arith.constant 0 : index
      %164 = vector.load %arg7[%c0_99, %c0_100] : memref<8x128xf32, #tpu.memory_space<vmem>>, vector<8x128xf32>
      tpu.vector_store %arg7[%c0_99, %c0_100], %163 {strides = array<i32>} : memref<8x128xf32, #tpu.memory_space<vmem>>, vector<8x128xf32>,
      %cst_101 = arith.constant 0.000000e+00 : f32
      %165 = vector.broadcast %cst_101 : f32 to vector<8x128xf32>
      %c0_102 = arith.constant 0 : index
      %c0_103 = arith.constant 0 : index
      %166 = vector.load %arg8[%c0_102, %c0_103] : memref<8x128xf32, #tpu.memory_space<vmem>>, vector<8x128xf32>
      tpu.vector_store %arg8[%c0_102, %c0_103], %165 {strides = array<i32>} : memref<8x128xf32, #tpu.memory_space<vmem>>, vector<8x128xf32>,
    } else {
    }
    %c0 = arith.constant 0 : index
    %c0_1 = arith.constant 0 : index
    %c0_2 = arith.constant 0 : index
    %3 = vector.load %arg3[%c0, %c0_1, %c0_2] : memref<1x8x128xi32, #tpu.memory_space<vmem>>, vector<1x8x128xi32>
    %4 = vector.shape_cast %3 : vector<1x8x128xi32> to vector<8x128xi32>
    %5 = tpu.iota {dimensions = array<i32: 0>} : vector<8x128xi32>
    %6 = tpu.iota {dimensions = array<i32: 1>} : vector<8x128xi32>
    %c8_i32 = arith.constant 8 : i32
    %7 = arith.muli %arg1, %c8_i32 : i32
    %8 = vector.broadcast %7 : i32 to vector<8x128xi32>
    %9 = arith.addi %8, %5 : vector<8x128xi32>
    %c128_i32 = arith.constant 128 : i32
    %10 = vector.broadcast %c128_i32 : i32 to vector<8x128xi32>
    %11 = arith.muli %9, %10 : vector<8x128xi32>
    %12 = arith.addi %11, %6 : vector<8x128xi32>
    %c4096_i32 = arith.constant 4096 : i32
    %13 = vector.broadcast %c4096_i32 : i32 to vector<8x128xi32>
    %14 = arith.cmpi slt, %12, %13 : vector<8x128xi32>
    %15 = arith.extui %14 : vector<8x128xi1> to vector<8x128xi32>
    %16 = arith.sitofp %15 : vector<8x128xi32> to vector<8x128xf32>
    %c0_3 = arith.constant 0 : index
    %c0_4 = arith.constant 0 : index
    %c0_5 = arith.constant 0 : index
    %c0_6 = arith.constant 0 : index
    %17 = vector.load %arg2[%c0_3, %c0_4, %c0_5, %c0_6] : memref<1x4x8x128xf32, #tpu.memory_space<vmem>>, vector<1x1x8x128xf32>
    %18 = vector.shape_cast %17 : vector<1x1x8x128xf32> to vector<8x128xf32>
    %c0_7 = arith.constant 0 : index
    %c1 = arith.constant 1 : index
    %c0_8 = arith.constant 0 : index
    %c0_9 = arith.constant 0 : index
    %19 = vector.load %arg2[%c0_7, %c1, %c0_8, %c0_9] : memref<1x4x8x128xf32, #tpu.memory_space<vmem>>, vector<1x1x8x128xf32>
    %20 = vector.shape_cast %19 : vector<1x1x8x128xf32> to vector<8x128xf32>
    %c0_10 = arith.constant 0 : index
    %c2 = arith.constant 2 : index
    %c0_11 = arith.constant 0 : index
    %c0_12 = arith.constant 0 : index
    %21 = vector.load %arg2[%c0_10, %c2, %c0_11, %c0_12] : memref<1x4x8x128xf32, #tpu.memory_space<vmem>>, vector<1x1x8x128xf32>
    %22 = vector.shape_cast %21 : vector<1x1x8x128xf32> to vector<8x128xf32>
    %c0_13 = arith.constant 0 : index
    %c3 = arith.constant 3 : index
    %c0_14 = arith.constant 0 : index
    %c0_15 = arith.constant 0 : index
    %23 = vector.load %arg2[%c0_13, %c3, %c0_14, %c0_15] : memref<1x4x8x128xf32, #tpu.memory_space<vmem>>, vector<1x1x8x128xf32>
    %24 = vector.shape_cast %23 : vector<1x1x8x128xf32> to vector<8x128xf32>
    %25 = arith.maximumf %18, %20 : vector<8x128xf32>
    %26 = arith.maximumf %25, %22 : vector<8x128xf32>
    %27 = arith.maximumf %26, %24 : vector<8x128xf32>
    %28 = arith.subf %18, %27 : vector<8x128xf32>
    %29 = math.exp %28 : vector<8x128xf32>
    %30 = arith.subf %20, %27 : vector<8x128xf32>
    %31 = math.exp %30 : vector<8x128xf32>
    %32 = arith.subf %22, %27 : vector<8x128xf32>
    %33 = math.exp %32 : vector<8x128xf32>
    %34 = arith.subf %24, %27 : vector<8x128xf32>
    %35 = math.exp %34 : vector<8x128xf32>
    %36 = arith.addf %29, %31 : vector<8x128xf32>
    %37 = arith.addf %36, %33 : vector<8x128xf32>
    %38 = arith.addf %37, %35 : vector<8x128xf32>
    %cst = arith.constant 1.000000e+00 : f32
    %39 = vector.broadcast %cst : f32 to vector<8x128xf32>
    %40 = arith.divf %39, %38 : vector<8x128xf32>
    %41 = math.log %38 : vector<8x128xf32>
    %c0_i32_16 = arith.constant 0 : i32
    %42 = vector.broadcast %c0_i32_16 : i32 to vector<8x128xi32>
    %43 = arith.cmpi eq, %4, %42 : vector<8x128xi32>
    %cst_17 = arith.constant 0.000000e+00 : f32
    %44 = vector.broadcast %cst_17 : f32 to vector<8x128xf32>
    %45 = arith.select %43, %18, %44 : vector<8x128xi1>, vector<8x128xf32>
    %c1_i32 = arith.constant 1 : i32
    %46 = vector.broadcast %c1_i32 : i32 to vector<8x128xi32>
    %47 = arith.cmpi eq, %4, %46 : vector<8x128xi32>
    %cst_18 = arith.constant 0.000000e+00 : f32
    %48 = vector.broadcast %cst_18 : f32 to vector<8x128xf32>
    %49 = arith.select %47, %20, %48 : vector<8x128xi1>, vector<8x128xf32>
    %50 = arith.addf %45, %49 : vector<8x128xf32>
    %c2_i32 = arith.constant 2 : i32
    %51 = vector.broadcast %c2_i32 : i32 to vector<8x128xi32>
    %52 = arith.cmpi eq, %4, %51 : vector<8x128xi32>
    %cst_19 = arith.constant 0.000000e+00 : f32
    %53 = vector.broadcast %cst_19 : f32 to vector<8x128xf32>
    %54 = arith.select %52, %22, %53 : vector<8x128xi1>, vector<8x128xf32>
    %55 = arith.addf %50, %54 : vector<8x128xf32>
    %c3_i32 = arith.constant 3 : i32
    %56 = vector.broadcast %c3_i32 : i32 to vector<8x128xi32>
    %57 = arith.cmpi eq, %4, %56 : vector<8x128xi32>
    %cst_20 = arith.constant 0.000000e+00 : f32
    %58 = vector.broadcast %cst_20 : f32 to vector<8x128xf32>
    %59 = arith.select %57, %24, %58 : vector<8x128xi1>, vector<8x128xf32>
    %60 = arith.addf %55, %59 : vector<8x128xf32>
    %61 = arith.subf %60, %27 : vector<8x128xf32>
    %62 = arith.subf %61, %41 : vector<8x128xf32>
    %cst_21 = arith.constant 0.000000e+00 : f32
    %63 = vector.broadcast %cst_21 : f32 to vector<8x128xf32>
    %64 = arith.subf %63, %62 : vector<8x128xf32>
    %c3_i32_22 = arith.constant 3 : i32
    %65 = vector.broadcast %c3_i32_22 : i32 to vector<8x128xi32>
    %66 = arith.cmpi ne, %4, %65 : vector<8x128xi32>
    %cst_23 = arith.constant 0.000000e+00 : f32
    %67 = vector.broadcast %cst_23 : f32 to vector<8x128xf32>
    %68 = arith.select %66, %16, %67 : vector<8x128xi1>, vector<8x128xf32>
    %c0_24 = arith.constant 0 : index
    %c0_25 = arith.constant 0 : index
    %69 = vector.load %arg7[%c0_24, %c0_25] : memref<8x128xf32, #tpu.memory_space<vmem>>, vector<8x128xf32>
    %70 = arith.mulf %64, %68 : vector<8x128xf32>
    %71 = arith.addf %69, %70 : vector<8x128xf32>
    %c0_26 = arith.constant 0 : index
    %c0_27 = arith.constant 0 : index
    %72 = vector.load %arg7[%c0_26, %c0_27] : memref<8x128xf32, #tpu.memory_space<vmem>>, vector<8x128xf32>
    tpu.vector_store %arg7[%c0_26, %c0_27], %71 {strides = array<i32>} : memref<8x128xf32, #tpu.memory_space<vmem>>, vector<8x128xf32>,
    %c0_28 = arith.constant 0 : index
    %c0_29 = arith.constant 0 : index
    %73 = vector.load %arg8[%c0_28, %c0_29] : memref<8x128xf32, #tpu.memory_space<vmem>>, vector<8x128xf32>
    %74 = arith.addf %73, %68 : vector<8x128xf32>
    %c0_30 = arith.constant 0 : index
    %c0_31 = arith.constant 0 : index
    %75 = vector.load %arg8[%c0_30, %c0_31] : memref<8x128xf32, #tpu.memory_space<vmem>>, vector<8x128xf32>
    tpu.vector_store %arg8[%c0_30, %c0_31], %74 {strides = array<i32>} : memref<8x128xf32, #tpu.memory_space<vmem>>, vector<8x128xf32>,
    %76 = arith.mulf %29, %40 : vector<8x128xf32>
    %c0_i32_32 = arith.constant 0 : i32
    %77 = vector.broadcast %c0_i32_32 : i32 to vector<8x128xi32>
    %78 = arith.cmpi eq, %4, %77 : vector<8x128xi32>
    %cst_33 = arith.constant 0.000000e+00 : f32
    %79 = vector.broadcast %cst_33 : f32 to vector<8x128xf32>
    %80 = arith.select %78, %16, %79 : vector<8x128xi1>, vector<8x128xf32>
    %c0_34 = arith.constant 0 : index
    %c0_35 = arith.constant 0 : index
    %c0_36 = arith.constant 0 : index
    %81 = vector.load %arg5[%c0_34, %c0_35, %c0_36] : memref<4x8x128xf32, #tpu.memory_space<vmem>>, vector<1x8x128xf32>
    %82 = vector.shape_cast %81 : vector<1x8x128xf32> to vector<8x128xf32>
    %83 = arith.mulf %76, %80 : vector<8x128xf32>
    %84 = arith.addf %82, %83 : vector<8x128xf32>
    %c0_37 = arith.constant 0 : index
    %c0_38 = arith.constant 0 : index
    %c0_39 = arith.constant 0 : index
    %85 = vector.load %arg5[%c0_37, %c0_38, %c0_39] : memref<4x8x128xf32, #tpu.memory_space<vmem>>, vector<1x8x128xf32>
    %86 = vector.shape_cast %85 : vector<1x8x128xf32> to vector<8x128xf32>
    %87 = vector.shape_cast %84 : vector<8x128xf32> to vector<1x8x128xf32>
    tpu.vector_store %arg5[%c0_37, %c0_38, %c0_39], %87 {strides = array<i32>} : memref<4x8x128xf32, #tpu.memory_space<vmem>>, vector<1x8x128xf32>,
    %c0_40 = arith.constant 0 : index
    %c0_41 = arith.constant 0 : index
    %c0_42 = arith.constant 0 : index
    %88 = vector.load %arg6[%c0_40, %c0_41, %c0_42] : memref<4x8x128xf32, #tpu.memory_space<vmem>>, vector<1x8x128xf32>
    %89 = vector.shape_cast %88 : vector<1x8x128xf32> to vector<8x128xf32>
    %90 = arith.mulf %76, %16 : vector<8x128xf32>
    %91 = arith.addf %90, %80 : vector<8x128xf32>
    %92 = arith.addf %89, %91 : vector<8x128xf32>
    %c0_43 = arith.constant 0 : index
    %c0_44 = arith.constant 0 : index
    %c0_45 = arith.constant 0 : index
    %93 = vector.load %arg6[%c0_43, %c0_44, %c0_45] : memref<4x8x128xf32, #tpu.memory_space<vmem>>, vector<1x8x128xf32>
    %94 = vector.shape_cast %93 : vector<1x8x128xf32> to vector<8x128xf32>
    %95 = vector.shape_cast %92 : vector<8x128xf32> to vector<1x8x128xf32>
    tpu.vector_store %arg6[%c0_43, %c0_44, %c0_45], %95 {strides = array<i32>} : memref<4x8x128xf32, #tpu.memory_space<vmem>>, vector<1x8x128xf32>,
    %96 = arith.mulf %31, %40 : vector<8x128xf32>
    %c1_i32_46 = arith.constant 1 : i32
    %97 = vector.broadcast %c1_i32_46 : i32 to vector<8x128xi32>
    %98 = arith.cmpi eq, %4, %97 : vector<8x128xi32>
    %cst_47 = arith.constant 0.000000e+00 : f32
    %99 = vector.broadcast %cst_47 : f32 to vector<8x128xf32>
    %100 = arith.select %98, %16, %99 : vector<8x128xi1>, vector<8x128xf32>
    %c1_48 = arith.constant 1 : index
    %c0_49 = arith.constant 0 : index
    %c0_50 = arith.constant 0 : index
    %101 = vector.load %arg5[%c1_48, %c0_49, %c0_50] : memref<4x8x128xf32, #tpu.memory_space<vmem>>, vector<1x8x128xf32>
    %102 = vector.shape_cast %101 : vector<1x8x128xf32> to vector<8x128xf32>
    %103 = arith.mulf %96, %100 : vector<8x128xf32>
    %104 = arith.addf %102, %103 : vector<8x128xf32>
    %c1_51 = arith.constant 1 : index
    %c0_52 = arith.constant 0 : index
    %c0_53 = arith.constant 0 : index
    %105 = vector.load %arg5[%c1_51, %c0_52, %c0_53] : memref<4x8x128xf32, #tpu.memory_space<vmem>>, vector<1x8x128xf32>
    %106 = vector.shape_cast %105 : vector<1x8x128xf32> to vector<8x128xf32>
    %107 = vector.shape_cast %104 : vector<8x128xf32> to vector<1x8x128xf32>
    tpu.vector_store %arg5[%c1_51, %c0_52, %c0_53], %107 {strides = array<i32>} : memref<4x8x128xf32, #tpu.memory_space<vmem>>, vector<1x8x128xf32>,
    %c1_54 = arith.constant 1 : index
    %c0_55 = arith.constant 0 : index
    %c0_56 = arith.constant 0 : index
    %108 = vector.load %arg6[%c1_54, %c0_55, %c0_56] : memref<4x8x128xf32, #tpu.memory_space<vmem>>, vector<1x8x128xf32>
    %109 = vector.shape_cast %108 : vector<1x8x128xf32> to vector<8x128xf32>
    %110 = arith.mulf %96, %16 : vector<8x128xf32>
    %111 = arith.addf %110, %100 : vector<8x128xf32>
    %112 = arith.addf %109, %111 : vector<8x128xf32>
    %c1_57 = arith.constant 1 : index
    %c0_58 = arith.constant 0 : index
    %c0_59 = arith.constant 0 : index
    %113 = vector.load %arg6[%c1_57, %c0_58, %c0_59] : memref<4x8x128xf32, #tpu.memory_space<vmem>>, vector<1x8x128xf32>
    %114 = vector.shape_cast %113 : vector<1x8x128xf32> to vector<8x128xf32>
    %115 = vector.shape_cast %112 : vector<8x128xf32> to vector<1x8x128xf32>
    tpu.vector_store %arg6[%c1_57, %c0_58, %c0_59], %115 {strides = array<i32>} : memref<4x8x128xf32, #tpu.memory_space<vmem>>, vector<1x8x128xf32>,
    %116 = arith.mulf %33, %40 : vector<8x128xf32>
    %c2_i32_60 = arith.constant 2 : i32
    %117 = vector.broadcast %c2_i32_60 : i32 to vector<8x128xi32>
    %118 = arith.cmpi eq, %4, %117 : vector<8x128xi32>
    %cst_61 = arith.constant 0.000000e+00 : f32
    %119 = vector.broadcast %cst_61 : f32 to vector<8x128xf32>
    %120 = arith.select %118, %16, %119 : vector<8x128xi1>, vector<8x128xf32>
    %c2_62 = arith.constant 2 : index
    %c0_63 = arith.constant 0 : index
    %c0_64 = arith.constant 0 : index
    %121 = vector.load %arg5[%c2_62, %c0_63, %c0_64] : memref<4x8x128xf32, #tpu.memory_space<vmem>>, vector<1x8x128xf32>
    %122 = vector.shape_cast %121 : vector<1x8x128xf32> to vector<8x128xf32>
    %123 = arith.mulf %116, %120 : vector<8x128xf32>
    %124 = arith.addf %122, %123 : vector<8x128xf32>
    %c2_65 = arith.constant 2 : index
    %c0_66 = arith.constant 0 : index
    %c0_67 = arith.constant 0 : index
    %125 = vector.load %arg5[%c2_65, %c0_66, %c0_67] : memref<4x8x128xf32, #tpu.memory_space<vmem>>, vector<1x8x128xf32>
    %126 = vector.shape_cast %125 : vector<1x8x128xf32> to vector<8x128xf32>
    %127 = vector.shape_cast %124 : vector<8x128xf32> to vector<1x8x128xf32>
    tpu.vector_store %arg5[%c2_65, %c0_66, %c0_67], %127 {strides = array<i32>} : memref<4x8x128xf32, #tpu.memory_space<vmem>>, vector<1x8x128xf32>,
    %c2_68 = arith.constant 2 : index
    %c0_69 = arith.constant 0 : index
    %c0_70 = arith.constant 0 : index
    %128 = vector.load %arg6[%c2_68, %c0_69, %c0_70] : memref<4x8x128xf32, #tpu.memory_space<vmem>>, vector<1x8x128xf32>
    %129 = vector.shape_cast %128 : vector<1x8x128xf32> to vector<8x128xf32>
    %130 = arith.mulf %116, %16 : vector<8x128xf32>
    %131 = arith.addf %130, %120 : vector<8x128xf32>
    %132 = arith.addf %129, %131 : vector<8x128xf32>
    %c2_71 = arith.constant 2 : index
    %c0_72 = arith.constant 0 : index
    %c0_73 = arith.constant 0 : index
    %133 = vector.load %arg6[%c2_71, %c0_72, %c0_73] : memref<4x8x128xf32, #tpu.memory_space<vmem>>, vector<1x8x128xf32>
    %134 = vector.shape_cast %133 : vector<1x8x128xf32> to vector<8x128xf32>
    %135 = vector.shape_cast %132 : vector<8x128xf32> to vector<1x8x128xf32>
    tpu.vector_store %arg6[%c2_71, %c0_72, %c0_73], %135 {strides = array<i32>} : memref<4x8x128xf32, #tpu.memory_space<vmem>>, vector<1x8x128xf32>,
    %136 = arith.mulf %35, %40 : vector<8x128xf32>
    %c3_i32_74 = arith.constant 3 : i32
    %137 = vector.broadcast %c3_i32_74 : i32 to vector<8x128xi32>
    %138 = arith.cmpi eq, %4, %137 : vector<8x128xi32>
    %cst_75 = arith.constant 0.000000e+00 : f32
    %139 = vector.broadcast %cst_75 : f32 to vector<8x128xf32>
    %140 = arith.select %138, %16, %139 : vector<8x128xi1>, vector<8x128xf32>
    %c3_76 = arith.constant 3 : index
    %c0_77 = arith.constant 0 : index
    %c0_78 = arith.constant 0 : index
    %141 = vector.load %arg5[%c3_76, %c0_77, %c0_78] : memref<4x8x128xf32, #tpu.memory_space<vmem>>, vector<1x8x128xf32>
    %142 = vector.shape_cast %141 : vector<1x8x128xf32> to vector<8x128xf32>
    %143 = arith.mulf %136, %140 : vector<8x128xf32>
    %144 = arith.addf %142, %143 : vector<8x128xf32>
    %c3_79 = arith.constant 3 : index
    %c0_80 = arith.constant 0 : index
    %c0_81 = arith.constant 0 : index
    %145 = vector.load %arg5[%c3_79, %c0_80, %c0_81] : memref<4x8x128xf32, #tpu.memory_space<vmem>>, vector<1x8x128xf32>
    %146 = vector.shape_cast %145 : vector<1x8x128xf32> to vector<8x128xf32>
    %147 = vector.shape_cast %144 : vector<8x128xf32> to vector<1x8x128xf32>
    tpu.vector_store %arg5[%c3_79, %c0_80, %c0_81], %147 {strides = array<i32>} : memref<4x8x128xf32, #tpu.memory_space<vmem>>, vector<1x8x128xf32>,
    %c3_82 = arith.constant 3 : index
    %c0_83 = arith.constant 0 : index
    %c0_84 = arith.constant 0 : index
    %148 = vector.load %arg6[%c3_82, %c0_83, %c0_84] : memref<4x8x128xf32, #tpu.memory_space<vmem>>, vector<1x8x128xf32>
    %149 = vector.shape_cast %148 : vector<1x8x128xf32> to vector<8x128xf32>
    %150 = arith.mulf %136, %16 : vector<8x128xf32>
    %151 = arith.addf %150, %140 : vector<8x128xf32>
    %152 = arith.addf %149, %151 : vector<8x128xf32>
    %c3_85 = arith.constant 3 : index
    %c0_86 = arith.constant 0 : index
    %c0_87 = arith.constant 0 : index
    %153 = vector.load %arg6[%c3_85, %c0_86, %c0_87] : memref<4x8x128xf32, #tpu.memory_space<vmem>>, vector<1x8x128xf32>
    %154 = vector.shape_cast %153 : vector<1x8x128xf32> to vector<8x128xf32>
    %155 = vector.shape_cast %152 : vector<8x128xf32> to vector<1x8x128xf32>
    tpu.vector_store %arg6[%c3_85, %c0_86, %c0_87], %155 {strides = array<i32>} : memref<4x8x128xf32, #tpu.memory_space<vmem>>, vector<1x8x128xf32>,
    %c3_i32_88 = arith.constant 3 : i32
    %156 = arith.cmpi eq, %arg1, %c3_i32_88 : i32
    %157 = arith.extui %156 : i1 to i32
    %c0_i32_89 = arith.constant 0 : i32
    %158 = arith.cmpi ne, %157, %c0_i32_89 : i32
    scf.if %158 {
      %c0_90 = arith.constant 0 : index
      %c0_91 = arith.constant 0 : index
      %159 = vector.load %arg7[%c0_90, %c0_91] : memref<8x128xf32, #tpu.memory_space<vmem>>, vector<8x128xf32>
      %160 = vector.shape_cast %159 : vector<8x128xf32> to vector<1x8x128xf32>
      %cst_92 = arith.constant dense<0.000000e+00> : vector<1xf32>
      %161 = vector.multi_reduction <add>, %160, %cst_92 [1, 2] : vector<1x8x128xf32> to vector<1xf32>
      %162 = vector.shape_cast %161 : vector<1xf32> to vector<1x1x1xf32>
      %163 = vector.extract %162[0, 0, 0] : f32 from vector<1x1x1xf32>
      %c0_93 = arith.constant 0 : index
      %c0_94 = arith.constant 0 : index
      %164 = vector.load %arg8[%c0_93, %c0_94] : memref<8x128xf32, #tpu.memory_space<vmem>>, vector<8x128xf32>
      %165 = vector.shape_cast %164 : vector<8x128xf32> to vector<1x8x128xf32>
      %cst_95 = arith.constant dense<0.000000e+00> : vector<1xf32>
      %166 = vector.multi_reduction <add>, %165, %cst_95 [1, 2] : vector<1x8x128xf32> to vector<1xf32>
      %167 = vector.shape_cast %166 : vector<1xf32> to vector<1x1x1xf32>
      %168 = vector.extract %167[0, 0, 0] : f32 from vector<1x1x1xf32>
      %c0_96 = arith.constant 0 : index
      %c0_97 = arith.constant 0 : index
      %c0_98 = arith.constant 0 : index
      %169 = vector.load %arg5[%c0_96, %c0_97, %c0_98] : memref<4x8x128xf32, #tpu.memory_space<vmem>>, vector<1x8x128xf32>
      %170 = vector.shape_cast %169 : vector<1x8x128xf32> to vector<8x128xf32>
      %171 = vector.shape_cast %170 : vector<8x128xf32> to vector<1x8x128xf32>
      %cst_99 = arith.constant dense<0.000000e+00> : vector<1xf32>
      %172 = vector.multi_reduction <add>, %171, %cst_99 [1, 2] : vector<1x8x128xf32> to vector<1xf32>
      %173 = vector.shape_cast %172 : vector<1xf32> to vector<1x1x1xf32>
      %174 = vector.extract %173[0, 0, 0] : f32 from vector<1x1x1xf32>
      %c0_100 = arith.constant 0 : index
      %c0_101 = arith.constant 0 : index
      %c0_102 = arith.constant 0 : index
      %175 = vector.load %arg6[%c0_100, %c0_101, %c0_102] : memref<4x8x128xf32, #tpu.memory_space<vmem>>, vector<1x8x128xf32>
      %176 = vector.shape_cast %175 : vector<1x8x128xf32> to vector<8x128xf32>
      %177 = vector.shape_cast %176 : vector<8x128xf32> to vector<1x8x128xf32>
      %cst_103 = arith.constant dense<0.000000e+00> : vector<1xf32>
      %178 = vector.multi_reduction <add>, %177, %cst_103 [1, 2] : vector<1x8x128xf32> to vector<1xf32>
      %179 = vector.shape_cast %178 : vector<1xf32> to vector<1x1x1xf32>
      %180 = vector.extract %179[0, 0, 0] : f32 from vector<1x1x1xf32>
      %cst_104 = arith.constant 2.000000e+00 : f32
      %181 = arith.mulf %cst_104, %174 : f32
      %cst_105 = arith.constant 9.99999974E-6 : f32
      %182 = arith.addf %181, %cst_105 : f32
      %cst_106 = arith.constant 9.99999974E-6 : f32
      %183 = arith.addf %180, %cst_106 : f32
      %184 = arith.divf %182, %183 : f32
      %cst_107 = arith.constant 0.000000e+00 : f32
      %185 = arith.addf %cst_107, %184 : f32
      %c1_108 = arith.constant 1 : index
      %c0_109 = arith.constant 0 : index
      %c0_110 = arith.constant 0 : index
      %186 = vector.load %arg5[%c1_108, %c0_109, %c0_110] : memref<4x8x128xf32, #tpu.memory_space<vmem>>, vector<1x8x128xf32>
      %187 = vector.shape_cast %186 : vector<1x8x128xf32> to vector<8x128xf32>
      %188 = vector.shape_cast %187 : vector<8x128xf32> to vector<1x8x128xf32>
      %cst_111 = arith.constant dense<0.000000e+00> : vector<1xf32>
      %189 = vector.multi_reduction <add>, %188, %cst_111 [1, 2] : vector<1x8x128xf32> to vector<1xf32>
      %190 = vector.shape_cast %189 : vector<1xf32> to vector<1x1x1xf32>
      %191 = vector.extract %190[0, 0, 0] : f32 from vector<1x1x1xf32>
      %c1_112 = arith.constant 1 : index
      %c0_113 = arith.constant 0 : index
      %c0_114 = arith.constant 0 : index
      %192 = vector.load %arg6[%c1_112, %c0_113, %c0_114] : memref<4x8x128xf32, #tpu.memory_space<vmem>>, vector<1x8x128xf32>
      %193 = vector.shape_cast %192 : vector<1x8x128xf32> to vector<8x128xf32>
      %194 = vector.shape_cast %193 : vector<8x128xf32> to vector<1x8x128xf32>
      %cst_115 = arith.constant dense<0.000000e+00> : vector<1xf32>
      %195 = vector.multi_reduction <add>, %194, %cst_115 [1, 2] : vector<1x8x128xf32> to vector<1xf32>
      %196 = vector.shape_cast %195 : vector<1xf32> to vector<1x1x1xf32>
      %197 = vector.extract %196[0, 0, 0] : f32 from vector<1x1x1xf32>
      %cst_116 = arith.constant 2.000000e+00 : f32
      %198 = arith.mulf %cst_116, %191 : f32
      %cst_117 = arith.constant 9.99999974E-6 : f32
      %199 = arith.addf %198, %cst_117 : f32
      %cst_118 = arith.constant 9.99999974E-6 : f32
      %200 = arith.addf %197, %cst_118 : f32
      %201 = arith.divf %199, %200 : f32
      %202 = arith.addf %185, %201 : f32
      %c2_119 = arith.constant 2 : index
      %c0_120 = arith.constant 0 : index
      %c0_121 = arith.constant 0 : index
      %203 = vector.load %arg5[%c2_119, %c0_120, %c0_121] : memref<4x8x128xf32, #tpu.memory_space<vmem>>, vector<1x8x128xf32>
      %204 = vector.shape_cast %203 : vector<1x8x128xf32> to vector<8x128xf32>
      %205 = vector.shape_cast %204 : vector<8x128xf32> to vector<1x8x128xf32>
      %cst_122 = arith.constant dense<0.000000e+00> : vector<1xf32>
      %206 = vector.multi_reduction <add>, %205, %cst_122 [1, 2] : vector<1x8x128xf32> to vector<1xf32>
      %207 = vector.shape_cast %206 : vector<1xf32> to vector<1x1x1xf32>
      %208 = vector.extract %207[0, 0, 0] : f32 from vector<1x1x1xf32>
      %c2_123 = arith.constant 2 : index
      %c0_124 = arith.constant 0 : index
      %c0_125 = arith.constant 0 : index
      %209 = vector.load %arg6[%c2_123, %c0_124, %c0_125] : memref<4x8x128xf32, #tpu.memory_space<vmem>>, vector<1x8x128xf32>
      %210 = vector.shape_cast %209 : vector<1x8x128xf32> to vector<8x128xf32>
      %211 = vector.shape_cast %210 : vector<8x128xf32> to vector<1x8x128xf32>
      %cst_126 = arith.constant dense<0.000000e+00> : vector<1xf32>
      %212 = vector.multi_reduction <add>, %211, %cst_126 [1, 2] : vector<1x8x128xf32> to vector<1xf32>
      %213 = vector.shape_cast %212 : vector<1xf32> to vector<1x1x1xf32>
      %214 = vector.extract %213[0, 0, 0] : f32 from vector<1x1x1xf32>
      %cst_127 = arith.constant 2.000000e+00 : f32
      %215 = arith.mulf %cst_127, %208 : f32
      %cst_128 = arith.constant 9.99999974E-6 : f32
      %216 = arith.addf %215, %cst_128 : f32
      %cst_129 = arith.constant 9.99999974E-6 : f32
      %217 = arith.addf %214, %cst_129 : f32
      %218 = arith.divf %216, %217 : f32
      %219 = arith.addf %202, %218 : f32
      %c3_130 = arith.constant 3 : index
      %c0_131 = arith.constant 0 : index
      %c0_132 = arith.constant 0 : index
      %220 = vector.load %arg5[%c3_130, %c0_131, %c0_132] : memref<4x8x128xf32, #tpu.memory_space<vmem>>, vector<1x8x128xf32>
      %221 = vector.shape_cast %220 : vector<1x8x128xf32> to vector<8x128xf32>
      %222 = vector.shape_cast %221 : vector<8x128xf32> to vector<1x8x128xf32>
      %cst_133 = arith.constant dense<0.000000e+00> : vector<1xf32>
      %223 = vector.multi_reduction <add>, %222, %cst_133 [1, 2] : vector<1x8x128xf32> to vector<1xf32>
      %224 = vector.shape_cast %223 : vector<1xf32> to vector<1x1x1xf32>
      %225 = vector.extract %224[0, 0, 0] : f32 from vector<1x1x1xf32>
      %c3_134 = arith.constant 3 : index
      %c0_135 = arith.constant 0 : index
      %c0_136 = arith.constant 0 : index
      %226 = vector.load %arg6[%c3_134, %c0_135, %c0_136] : memref<4x8x128xf32, #tpu.memory_space<vmem>>, vector<1x8x128xf32>
      %227 = vector.shape_cast %226 : vector<1x8x128xf32> to vector<8x128xf32>
      %228 = vector.shape_cast %227 : vector<8x128xf32> to vector<1x8x128xf32>
      %cst_137 = arith.constant dense<0.000000e+00> : vector<1xf32>
      %229 = vector.multi_reduction <add>, %228, %cst_137 [1, 2] : vector<1x8x128xf32> to vector<1xf32>
      %230 = vector.shape_cast %229 : vector<1xf32> to vector<1x1x1xf32>
      %231 = vector.extract %230[0, 0, 0] : f32 from vector<1x1x1xf32>
      %cst_138 = arith.constant 2.000000e+00 : f32
      %232 = arith.mulf %cst_138, %225 : f32
      %cst_139 = arith.constant 9.99999974E-6 : f32
      %233 = arith.addf %232, %cst_139 : f32
      %cst_140 = arith.constant 9.99999974E-6 : f32
      %234 = arith.addf %231, %cst_140 : f32
      %235 = arith.divf %233, %234 : f32
      %236 = arith.addf %219, %235 : f32
      %237 = tpu.iota {dimensions = array<i32: 2>} : vector<1x1x128xi32>
      %c0_i32_141 = arith.constant 0 : i32
      %238 = vector.broadcast %c0_i32_141 : i32 to vector<1x1x128xi32>
      %239 = arith.cmpi eq, %237, %238 : vector<1x1x128xi32>
      %c1_i32_142 = arith.constant 1 : i32
      %240 = vector.broadcast %c1_i32_142 : i32 to vector<1x1x128xi32>
      %241 = arith.cmpi eq, %237, %240 : vector<1x1x128xi32>
      %c2_i32_143 = arith.constant 2 : i32
      %242 = vector.broadcast %c2_i32_143 : i32 to vector<1x1x128xi32>
      %243 = arith.cmpi eq, %237, %242 : vector<1x1x128xi32>
      %cst_144 = arith.constant 0.000000e+00 : f32
      %244 = vector.broadcast %236 : f32 to vector<1x1x128xf32>
      %245 = vector.broadcast %cst_144 : f32 to vector<1x1x128xf32>
      %246 = arith.select %243, %244, %245 : vector<1x1x128xi1>, vector<1x1x128xf32>
      %247 = vector.broadcast %168 : f32 to vector<1x1x128xf32>
      %248 = arith.select %241, %247, %246 : vector<1x1x128xi1>, vector<1x1x128xf32>
      %249 = vector.broadcast %163 : f32 to vector<1x1x128xf32>
      %250 = arith.select %239, %249, %248 : vector<1x1x128xi1>, vector<1x1x128xf32>
      %c0_145 = arith.constant 0 : index
      %c0_146 = arith.constant 0 : index
      %c0_147 = arith.constant 0 : index
      %251 = vector.load %arg4[%c0_145, %c0_146, %c0_147] : memref<1x1x128xf32, #tpu.memory_space<vmem>>, vector<1x1x128xf32>
      tpu.vector_store %arg4[%c0_145, %c0_146, %c0_147], %250 {strides = array<i32>} : memref<1x1x128xf32, #tpu.memory_space<vmem>>, vector<1x1x128xf32>,
    } else {
    }
    return
  }
  func.func @transform_0(%arg0: i32, %arg1: i32) -> (i32, i32, i32, i32) {
    %c0_i32 = arith.constant 0 : i32
    %c0_i32_0 = arith.constant 0 : i32
    %c0_i32_1 = arith.constant 0 : i32
    return %arg0, %c0_i32, %arg1, %c0_i32_0 : i32, i32, i32, i32
  }
  func.func @transform_1(%arg0: i32, %arg1: i32) -> (i32, i32, i32) {
    %c0_i32 = arith.constant 0 : i32
    %c0_i32_0 = arith.constant 0 : i32
    return %arg0, %arg1, %c0_i32 : i32, i32, i32
  }
  func.func @transform_2(%arg0: i32, %arg1: i32) -> (i32, i32, i32) {
    %c0_i32 = arith.constant 0 : i32
    %c0_i32_0 = arith.constant 0 : i32
    %c0_i32_1 = arith.constant 0 : i32
    return %arg0, %c0_i32, %c0_i32_0 : i32, i32, i32
  }
}

</mosaic_0001>

<llo_original>
// kernel: tpu_custom_call.1
$region0: #{tpu_custom_call.1}
  #allocation0 [shape = 'u32[]', space=smem, size = 0x4, offset = 0x4, fixed_abs, tag = 'smem constant byte address 0x4 - core index']
  #allocation1 [shape = 'u32[144,128]{1,0:T(1,128)}', space=vmem, size = 0x12000, scoped, tag = 'internal scratch']
  #allocation2 [shape = 'f32[4,8,128]{2,1,0:T(8,128)}', space=vmem, size = 0x4000, scoped, tag = 'scratch operand']
  #allocation3 [shape = 'f32[4,8,128]{2,1,0:T(8,128)}', space=vmem, size = 0x4000, scoped, tag = 'scratch operand']
  #allocation4 [shape = 'f32[8,128]{1,0:T(8,128)}', space=vmem, size = 0x1000, scoped, tag = 'scratch operand']
  #allocation5 [shape = 'f32[8,128]{1,0:T(8,128)}', space=vmem, size = 0x1000, scoped, tag = 'scratch operand']
  %s0 = inlined_call_operand.hbm [shape: f32[2,4,32,128], index: 0, kind: input, shape index: {}]
  %s1 = inlined_call_operand.hbm [shape: s32[2,32,128], index: 1, kind: input, shape index: {}]
  %s2 = inlined_call_operand.hbm [shape: f32[2,1,128], index: 2, kind: output, shape index: {}]
  %s3 = sld [smem:[#allocation0]]
  $region57: #{tpu_custom_call.1} parent=0
    _
  %s5 = ssub.s32 1, %s3
  %s6 = scalar_select 0, %s5, %s3
  $region1: #{tpu_custom_call.1} parent=0
    #allocation6 [shape = 'u8[32768]{0}', space=vmem, size = 0x8000, scoped, tag = 'input window, operand 0']
    #allocation7 [shape = 's32[2]{0}', space=sflag, size = 0x8, scoped, tag = 'scoped memory for tpu_custom_call.1']
    #allocation8 [shape = 's32[2]{0}', space=sflag, size = 0x8, scoped, tag = 'scoped memory for tpu_custom_call.1']
    #allocation9 [shape = 'u8[8192]{0}', space=vmem, size = 0x2000, scoped, tag = 'input window, operand 1']
    #allocation10 [shape = 's32[2]{0}', space=sflag, size = 0x8, scoped, tag = 'scoped memory for tpu_custom_call.1']
    #allocation11 [shape = 'u8[1024]{0}', space=vmem, size = 0x400, scoped, tag = 'output window, operand 0']
    %7 = vsyncpa [#allocation7], 0
    %s8 = scalar_lea.sflag [#allocation7], 1
    %9 = vsyncpa %s8, 0
    %10 = vsyncpa [#allocation10], 0
    %s11 = scalar_lea.sflag [#allocation10], 1
    %12 = vsyncpa %s11, 0
    %13 = vsyncpa [#allocation8], 0
    %s14 = scalar_lea.sflag [#allocation8], 1
    %15 = vsyncpa %s14, 0
    loop: start=0, step=1, limit=10
    $region2: #{tpu_custom_call.1} parent=1 // loop_pre_header
      _
    $region3: #{tpu_custom_call.1} parent=1 // loop_header
      %s17 = sphi 0, %s21
      %p18 = scmp.ge.s32.totalorder %s17, 10
      %s24 = sphi 0, %s36
      %s25 = sphi 0, %s32
      %s26 = sphi 0, %s24
      %s27 = sphi 0, %s25
      %s28 = sphi 0, %s26
      %s29 = sphi 0, %s27
      %s41 = sphi 0, %s43
      %s44 = sphi 0, %s41
      %s45 = sphi 0, %s44
      %s61 = sphi 0, %s45
      %s69 = sphi 0, %s71
      %s72 = sphi 0, %s69
      %s73 = sphi 0, %s72
      %s89 = sphi 0, %s73
      %s95 = sphi 0, %s97
      %s98 = sphi 0, %s95
      %s99 = sphi 0, %s98
      %s115 = sphi 0, %s99
    $region4: #{tpu_custom_call.1} parent=1 // loop_header_branch
      %20 = sbr.rel (%p18) target = $region8
    $region5: #{tpu_custom_call.1} parent=1 // loop_body
      %s22 = ssub.s32 %s17, 1
      %s23 = ssub.s32 %s17, 2
      %s30 = sadd.s32 1, %s25
      %p31 = scmp.ge.s32.totalorder %s30, 4
      %s32 = scalar_select %p31, 0, %s30
      %s33 = sadd.s32 1, %s24
      %s34 = scalar_select %p31, %s33, %s24
      %p35 = scmp.ge.s32.totalorder %s34, 2
      %s36 = scalar_select %p35, 0, %s34
      %s37 = ssub.s32 %s24, %s36
      %s38 = ssub.s32 %s25, %s32
      %s39 = sor.u32 %s37, %s38
      %p40 = scmp.eq.s32.totalorder %s39, 0
      %s42 = sadd.s32 %s41, 1
      %s43 = scalar_select %p40, %s41, %s42
      %p46 = pneg %p40
      %p47 = scmp.eq.s32.totalorder %s17, 7
      %p48 = por %p46, %p47
      %p49 = scmp.ne.s32.totalorder %s41, %s44
      %p50 = scmp.eq.s32.totalorder %s17, 0
      %p51 = por %p49, %p50
      %p52 = scmp.ne.s32.totalorder %s41, %s44
      %p53 = scmp.eq.s32.totalorder %s22, 7
      %p54 = por %p52, %p53
      %p55 = scmp.ne.s32.totalorder %s44, %s45
      %p56 = scmp.eq.s32.totalorder %s22, 0
      %p57 = por %p55, %p56
      %p58 = scmp.ne.s32.totalorder %s44, %s45
      %p59 = scmp.eq.s32.totalorder %s23, 7
      %p60 = por %p58, %p59
      %p62 = scmp.ne.s32.totalorder %s45, %s61
      %p63 = scmp.eq.s32.totalorder %s23, 0
      %p64 = por %p62, %p63
      %s65 = ssub.s32 %s24, %s36
      %s66 = ssub.s32 %s25, %s32
      %s67 = sor.u32 %s65, %s66
      %p68 = scmp.eq.s32.totalorder %s67, 0
      %s70 = sadd.s32 %s69, 1
      %s71 = scalar_select %p68, %s69, %s70
      %p74 = pneg %p68
      %p75 = scmp.eq.s32.totalorder %s17, 7
      %p76 = por %p74, %p75
      %p77 = scmp.ne.s32.totalorder %s69, %s72
      %p78 = scmp.eq.s32.totalorder %s17, 0
      %p79 = por %p77, %p78
      %p80 = scmp.ne.s32.totalorder %s69, %s72
      %p81 = scmp.eq.s32.totalorder %s22, 7
      %p82 = por %p80, %p81
      %p83 = scmp.ne.s32.totalorder %s72, %s73
      %p84 = scmp.eq.s32.totalorder %s22, 0
      %p85 = por %p83, %p84
      %p86 = scmp.ne.s32.totalorder %s72, %s73
      %p87 = scmp.eq.s32.totalorder %s23, 7
      %p88 = por %p86, %p87
      %p90 = scmp.ne.s32.totalorder %s73, %s89
      %p91 = scmp.eq.s32.totalorder %s23, 0
      %p92 = por %p90, %p91
      %s93 = ssub.s32 %s24, %s36
      %p94 = scmp.eq.s32.totalorder %s93, 0
      %s96 = sadd.s32 %s95, 1
      %s97 = scalar_select %p94, %s95, %s96
      %p100 = pneg %p94
      %p101 = scmp.eq.s32.totalorder %s17, 7
      %p102 = por %p100, %p101
      %p103 = scmp.ne.s32.totalorder %s95, %s98
      %p104 = scmp.eq.s32.totalorder %s17, 0
      %p105 = por %p103, %p104
      %p106 = scmp.ne.s32.totalorder %s95, %s98
      %p107 = scmp.eq.s32.totalorder %s22, 7
      %p108 = por %p106, %p107
      %p109 = scmp.ne.s32.totalorder %s98, %s99
      %p110 = scmp.eq.s32.totalorder %s22, 0
      %p111 = por %p109, %p110
      %p112 = scmp.ne.s32.totalorder %s98, %s99
      %p113 = scmp.eq.s32.totalorder %s23, 7
      %p114 = por %p112, %p113
      %p116 = scmp.ne.s32.totalorder %s99, %s115
      %p117 = scmp.eq.s32.totalorder %s23, 0
      %p118 = por %p116, %p117
      %p119 = scmp.le.s32.totalorder 1, %s17
      %p120 = scmp.lt.s32.totalorder %s17, 9
      %p121 = pnand %p119, %p120
      %p122 = pneg %p121
      // Predicated region
      $region9: #{tpu_custom_call.1} parent=5 // pred_check
        _
      $region10: #{tpu_custom_call.1} parent=5 // pred_check_branch
        %124 = sbr.rel (%p121) target = $region12
      $region11: #{tpu_custom_call.1} parent=5 // pred_region
        %s125 = ssub.s32 %s17, 1
      $region12: #{tpu_custom_call.1} parent=5 // pred_fallthru
        _
      %p126 = scmp.lt.s32.totalorder %s17, 8
      // Predicated region
      $region13: #{tpu_custom_call.1} parent=5 // pred_check
        %p127 = pneg %p126
      $region14: #{tpu_custom_call.1} parent=5 // pred_check_branch
        %129 = sbr.rel (%p127) target = $region16
      $region15: #{tpu_custom_call.1} parent=5 // pred_region
        // Predicated region
        $region17: #{tpu_custom_call.1} parent=15 // pred_check
          %p130 = pneg %p51
        $region18: #{tpu_custom_call.1} parent=15 // pred_check_branch
          %132 = sbr.rel (%p130) target = $region20
        $region19: #{tpu_custom_call.1} parent=15 // pred_region
          %s133 = sand.u32 %s41, 1
          %s134 = scalar_lea.sflag [#allocation7], %s133
          %s135 = sand.u32 %s41, 1
          %s136 = smul.addr %s135, 32
          %s137 = scalar_lea.vmem [#allocation6], %s136
          %s139 = ssub.s32 512, 512
          %140 = vsyncadd %s134, %s139
          %s141 = smul.addr %s24, 16
          %s142 = sadd.s32 %s25, %s141
          %s143 = smul.addr %s142, 128
          %s144 = scalar_lea.hbm %s0, %s143
          %s145 = sshll.u32 %s137, 4
          %s146 = int_to_ptr.vmem [resolvable:$true] %s145
          %151 = dma.hbm_to_vmem [thread:$0]  %s144, 512, %s146, %s134, 512, 128, 8
        $region20: #{tpu_custom_call.1} parent=15 // pred_fallthru
          _
        // Predicated region
        $region21: #{tpu_custom_call.1} parent=15 // pred_check
          %p152 = pneg %p79
        $region22: #{tpu_custom_call.1} parent=15 // pred_check_branch
          %154 = sbr.rel (%p152) target = $region24
        $region23: #{tpu_custom_call.1} parent=15 // pred_region
          %s155 = sand.u32 %s69, 1
          %s156 = scalar_lea.sflag [#allocation10], %s155
          %s157 = sand.u32 %s69, 1
          %s158 = smul.addr %s157, 8
          %s159 = scalar_lea.vmem [#allocation9], %s158
          %s161 = ssub.s32 128, 128
          %162 = vsyncadd %s156, %s161
          %s163 = smul.addr %s24, 4
          %s164 = sadd.s32 %s25, %s163
          %s165 = smul.addr %s164, 128
          %s166 = scalar_lea.hbm %s1, %s165
          %s168 = sshll.u32 %s159, 4
          %s169 = int_to_ptr.vmem [resolvable:$true] %s168
          %171 = dma.hbm_to_vmem [thread:$0]  %s166, 128, %s169, %s156
        $region24: #{tpu_custom_call.1} parent=15 // pred_fallthru
          _
      $region16: #{tpu_custom_call.1} parent=5 // pred_fallthru
        _
      %p172 = scmp.le.s32.totalorder 1, %s17
      %p173 = scmp.lt.s32.totalorder %s17, 9
      %p174 = pnand %p172, %p173
      %p175 = pneg %p174
      // Predicated region
      $region25: #{tpu_custom_call.1} parent=5 // pred_check
        _
      $region26: #{tpu_custom_call.1} parent=5 // pred_check_branch
        %177 = sbr.rel (%p174) target = $region28
      $region27: #{tpu_custom_call.1} parent=5 // pred_region
        %s178 = ssub.s32 %s17, 1
        %s179 = sand.u32 %s44, 1
        %s180 = scalar_lea.sflag [#allocation7], %s179
        %s181 = sand.u32 %s44, 1
        %s182 = smul.addr %s181, 32
        %s183 = scalar_lea.vmem [#allocation6], %s182
        // Predicated region
        $region29: #{tpu_custom_call.1} parent=27 // pred_check
          %p184 = pneg %p57
        $region30: #{tpu_custom_call.1} parent=27 // pred_check_branch
          %186 = sbr.rel (%p184) target = $region32
        $region31: #{tpu_custom_call.1} parent=27 // pred_region
          %187 = dma.done %s180, 512
        $region32: #{tpu_custom_call.1} parent=27 // pred_fallthru
          _
        %s188 = sand.u32 %s72, 1
        %s189 = scalar_lea.sflag [#allocation10], %s188
        %s190 = sand.u32 %s72, 1
        %s191 = smul.addr %s190, 8
        %s192 = scalar_lea.vmem [#allocation9], %s191
        // Predicated region
        $region33: #{tpu_custom_call.1} parent=27 // pred_check
          %p193 = pneg %p85
        $region34: #{tpu_custom_call.1} parent=27 // pred_check_branch
          %195 = sbr.rel (%p193) target = $region36
        $region35: #{tpu_custom_call.1} parent=27 // pred_region
          %196 = dma.done %s189, 128
        $region36: #{tpu_custom_call.1} parent=27 // pred_fallthru
          _
        %s197 = sand.u32 %s44, 1
        %s198 = scalar_lea.sflag [#allocation7], %s197
        %s199 = sand.u32 %s44, 1
        %s200 = smul.addr %s199, 32
        %s201 = scalar_lea.vmem [#allocation6], %s200
        %p202 = pneg %p57
        %p203 = pneg %p54
        %s204 = sand.u32 %s72, 1
        %s205 = scalar_lea.sflag [#allocation10], %s204
        %s206 = sand.u32 %s72, 1
        %s207 = smul.addr %s206, 8
        %s208 = scalar_lea.vmem [#allocation9], %s207
        %p209 = pneg %p85
        %p210 = pneg %p82
        %p211 = pneg %p111
        %p212 = pneg %p108
        %s213 = sand.u32 %s98, 1
        %s214 = scalar_lea.sflag [#allocation8], %s213
        %s215 = sand.u32 %s98, 1
        %s216 = scalar_lea.vmem [#allocation11], %s215
        %p217 = scmp.eq.s32.totalorder %s27, 0
        // Predicated region
        $region37: #{tpu_custom_call.1} parent=27 // pred_check
          %p218 = pneg %p217
        $region38: #{tpu_custom_call.1} parent=27 // pred_check_branch
          %220 = sbr.rel (%p218) target = $region40
        $region39: #{tpu_custom_call.1} parent=27 // pred_region
          %221 = vst [vmem:[#allocation2] sm:$0xff] 0.0
          %222 = vst [vmem:[#allocation2 + $0x8] sm:$0xff] 0.0
          %223 = vst [vmem:[#allocation2 + $0x10] sm:$0xff] 0.0
          %224 = vst [vmem:[#allocation2 + $0x18] sm:$0xff] 0.0
          %225 = vst [vmem:[#allocation3] sm:$0xff] 0.0
          %226 = vst [vmem:[#allocation3 + $0x8] sm:$0xff] 0.0
          %227 = vst [vmem:[#allocation3 + $0x10] sm:$0xff] 0.0
          %228 = vst [vmem:[#allocation3 + $0x18] sm:$0xff] 0.0
          %229 = vst [vmem:[#allocation4] sm:$0xff] 0.0
          %230 = vst [vmem:[#allocation5] sm:$0xff] 0.0
        $region40: #{tpu_custom_call.1} parent=27 // pred_fallthru
          _
        %v231 = vld [vmem:[%s192] sm:$0xff]
        %v232 = vlaneseq
        %v233 = vshrl.u32 %v232, 7
        %v234 = vlaneseq
        %v235 = vand.u32 %v234, 127
        %s236 = smul.u32 %s27, 8
        %v237 = vstv %s236
        %v238 = vadd.s32 %v237, %v233
        %v239 = vmul.u32 %v238, 128
        %v240 = vadd.s32 %v239, %v235
        %vm241 = vcmp.lt.s32.totalorder %v240, 4096
        %v242 = vsel %vm241, 1, 0
        %v243 = vcvt.s32.f32 %v242
        %v244 = vld [vmem:[%s183] sm:$0xff]
        %s245 = scalar_lea.vmem %s183, 8 [#allocation6]
        %v246 = vld [vmem:[%s245] sm:$0xff]
        %s247 = scalar_lea.vmem %s183, 16 [#allocation6]
        %v248 = vld [vmem:[%s247] sm:$0xff]
        %s249 = scalar_lea.vmem %s183, 24 [#allocation6]
        %v250 = vld [vmem:[%s249] sm:$0xff]
        %v251 = vmax.f32 %v244, %v246
        %v252 = vmax.f32 %v251, %v248
        %v253 = vmax.f32 %v252, %v250
        %v254 = vsub.f32 %v244, %v253
        %v255 = vmul.f32 %v254, 1.442695
        %v256 = vpow.pop %v255
        %v257 = vsub.f32 %v246, %v253
        %v258 = vmul.f32 %v257, 1.442695
        %v259 = vpow.pop %v258
        %v260 = vsub.f32 %v248, %v253
        %v261 = vmul.f32 %v260, 1.442695
        %v262 = vpow.pop %v261
        %v263 = vsub.f32 %v250, %v253
        %v264 = vmul.f32 %v263, 1.442695
        %v265 = vpow.pop %v264
        %v266 = vadd.f32 %v256, %v259
        %v267 = vadd.f32 %v266, %v262
        %v268 = vadd.f32 %v267, %v265
        %v269 = vrcp.pop %v268
        %v270 = vmul.f32 1.0, %v269
        %v271 = vlog2.pop %v268
        %v272 = vmul.f32 %v271, 0.6931472
        %vm273 = vcmp.eq.s32.totalorder %v231, 0
        %v274 = vsel %vm273, %v244, 0.0
        %vm275 = vcmp.eq.s32.totalorder %v231, 1
        %v276 = vsel %vm275, %v246, 0.0
        %v277 = vadd.f32 %v274, %v276
        %vm278 = vcmp.eq.s32.totalorder %v231, 2
        %v279 = vsel %vm278, %v248, 0.0
        %v280 = vadd.f32 %v277, %v279
        %vm281 = vcmp.eq.s32.totalorder %v231, 3
        %v282 = vsel %vm281, %v250, 0.0
        %v283 = vadd.f32 %v280, %v282
        %v284 = vsub.f32 %v283, %v253
        %v285 = vsub.f32 %v284, %v272
        %v286 = vsub.f32 0.0, %v285
        %vm287 = vcmp.ne.s32.totalorder %v231, 3
        %v288 = vsel %vm287, %v243, 0.0
        %v289 = vld [vmem:[#allocation4] sm:$0xff]
        %v290 = vmul.f32 %v286, %v288
        %v291 = vadd.f32 %v289, %v290
        %292 = vst [vmem:[#allocation4] sm:$0xff] %v291
        %v293 = vld [vmem:[#allocation5] sm:$0xff]
        %v294 = vadd.f32 %v293, %v288
        %295 = vst [vmem:[#allocation5] sm:$0xff] %v294
        %v296 = vmul.f32 %v256, %v270
        %v297 = vsel %vm273, %v243, 0.0
        %v298 = vld [vmem:[#allocation2] sm:$0xff]
        %v299 = vmul.f32 %v296, %v297
        %v300 = vadd.f32 %v298, %v299
        %301 = vst [vmem:[#allocation2] sm:$0xff] %v300
        %v302 = vld [vmem:[#allocation3] sm:$0xff]
        %v303 = vmul.f32 %v296, %v243
        %v304 = vadd.f32 %v303, %v297
        %v305 = vadd.f32 %v302, %v304
        %306 = vst [vmem:[#allocation3] sm:$0xff] %v305
        %v307 = vmul.f32 %v259, %v270
        %v308 = vsel %vm275, %v243, 0.0
        %s309 = scalar_lea.vmem [#allocation2], 8
        %v310 = vld [vmem:[%s309] sm:$0xff]
        %v311 = vmul.f32 %v307, %v308
        %v312 = vadd.f32 %v310, %v311
        %313 = vst [vmem:[%s309] sm:$0xff] %v312
        %s314 = scalar_lea.vmem [#allocation3], 8
        %v315 = vld [vmem:[%s314] sm:$0xff]
        %v316 = vmul.f32 %v307, %v243
        %v317 = vadd.f32 %v316, %v308
        %v318 = vadd.f32 %v315, %v317
        %319 = vst [vmem:[%s314] sm:$0xff] %v318
        %v320 = vmul.f32 %v262, %v270
        %v321 = vsel %vm278, %v243, 0.0
        %s322 = scalar_lea.vmem [#allocation2], 16
        %v323 = vld [vmem:[%s322] sm:$0xff]
        %v324 = vmul.f32 %v320, %v321
        %v325 = vadd.f32 %v323, %v324
        %326 = vst [vmem:[%s322] sm:$0xff] %v325
        %s327 = scalar_lea.vmem [#allocation3], 16
        %v328 = vld [vmem:[%s327] sm:$0xff]
        %v329 = vmul.f32 %v320, %v243
        %v330 = vadd.f32 %v329, %v321
        %v331 = vadd.f32 %v328, %v330
        %332 = vst [vmem:[%s327] sm:$0xff] %v331
        %v333 = vmul.f32 %v265, %v270
        %v334 = vsel %vm281, %v243, 0.0
        %s335 = scalar_lea.vmem [#allocation2], 24
        %v336 = vld [vmem:[%s335] sm:$0xff]
        %v337 = vmul.f32 %v333, %v334
        %v338 = vadd.f32 %v336, %v337
        %339 = vst [vmem:[%s335] sm:$0xff] %v338
        %s340 = scalar_lea.vmem [#allocation3], 24
        %v341 = vld [vmem:[%s340] sm:$0xff]
        %v342 = vmul.f32 %v333, %v243
        %v343 = vadd.f32 %v342, %v334
        %v344 = vadd.f32 %v341, %v343
        %345 = vst [vmem:[%s340] sm:$0xff] %v344
        %p346 = scmp.eq.s32.totalorder %s27, 3
        // Predicated region
        $region41: #{tpu_custom_call.1} parent=27 // pred_check
          %p347 = pneg %p346
        $region42: #{tpu_custom_call.1} parent=27 // pred_check_branch
          %349 = sbr.rel (%p347) target = $region44
        $region43: #{tpu_custom_call.1} parent=27 // pred_region
          %v350 = vld [vmem:[#allocation4] sm:$0xff]
          %351 = vadd.xlane.f32.xlu0 %v350
          %v352 = vpop.xlane.xlu0 %351
          %v353 = vrot.slane %v352, 4
          %v354 = vadd.f32 %v352, %v353
          %v355 = vrot.slane %v354, 2
          %v356 = vadd.f32 %v354, %v355
          %v357 = vrot.slane %v356, 1
          %v358 = vadd.f32 %v356, %v357
          %s359 = vtos %v358
          %v360 = vld [vmem:[#allocation5] sm:$0xff]
          %361 = vadd.xlane.f32.xlu0 %v360
          %v362 = vpop.xlane.xlu0 %361
          %v363 = vrot.slane %v362, 4
          %v364 = vadd.f32 %v362, %v363
          %v365 = vrot.slane %v364, 2
          %v366 = vadd.f32 %v364, %v365
          %v367 = vrot.slane %v366, 1
          %v368 = vadd.f32 %v366, %v367
          %s369 = vtos %v368
          %v370 = vld [vmem:[#allocation2] sm:$0xff]
          %371 = vadd.xlane.f32.xlu0 %v370
          %v372 = vpop.xlane.xlu0 %371
          %v373 = vrot.slane %v372, 4
          %v374 = vadd.f32 %v372, %v373
          %v375 = vrot.slane %v374, 2
          %v376 = vadd.f32 %v374, %v375
          %v377 = vrot.slane %v376, 1
          %v378 = vadd.f32 %v376, %v377
          %s379 = vtos %v378
          %v380 = vld [vmem:[#allocation3] sm:$0xff]
          %381 = vadd.xlane.f32.xlu0 %v380
          %v382 = vpop.xlane.xlu0 %381
          %v383 = vrot.slane %v382, 4
          %v384 = vadd.f32 %v382, %v383
          %v385 = vrot.slane %v384, 2
          %v386 = vadd.f32 %v384, %v385
          %v387 = vrot.slane %v386, 1
          %v388 = vadd.f32 %v386, %v387
          %s389 = vtos %v388
          %s390 = smul.f32 %s379, 2.0
          %s391 = sadd.f32 %s390, 1e-05
          %s392 = sadd.f32 %s389, 1e-05
          %v393 = vstv %s392
          %v394 = vrcp.pop %v393
          %s395 = vtos %v394
          %s396 = smul.f32 %s391, %s395
          %s397 = sadd.f32 %s396, 0.0
          %v398 = vld [vmem:[%s309] sm:$0xff]
          %399 = vadd.xlane.f32.xlu0 %v398
          %v400 = vpop.xlane.xlu0 %399
          %v401 = vrot.slane %v400, 4
          %v402 = vadd.f32 %v400, %v401
          %v403 = vrot.slane %v402, 2
          %v404 = vadd.f32 %v402, %v403
          %v405 = vrot.slane %v404, 1
          %v406 = vadd.f32 %v404, %v405
          %s407 = vtos %v406
          %v408 = vld [vmem:[%s314] sm:$0xff]
          %409 = vadd.xlane.f32.xlu0 %v408
          %v410 = vpop.xlane.xlu0 %409
          %v411 = vrot.slane %v410, 4
          %v412 = vadd.f32 %v410, %v411
          %v413 = vrot.slane %v412, 2
          %v414 = vadd.f32 %v412, %v413
          %v415 = vrot.slane %v414, 1
          %v416 = vadd.f32 %v414, %v415
          %s417 = vtos %v416
          %s418 = smul.f32 %s407, 2.0
          %s419 = sadd.f32 %s418, 1e-05
          %s420 = sadd.f32 %s417, 1e-05
          %v421 = vstv %s420
          %v422 = vrcp.pop %v421
          %s423 = vtos %v422
          %s424 = smul.f32 %s419, %s423
          %s425 = sadd.f32 %s397, %s424
          %v426 = vld [vmem:[%s322] sm:$0xff]
          %427 = vadd.xlane.f32.xlu0 %v426
          %v428 = vpop.xlane.xlu0 %427
          %v429 = vrot.slane %v428, 4
          %v430 = vadd.f32 %v428, %v429
          %v431 = vrot.slane %v430, 2
          %v432 = vadd.f32 %v430, %v431
          %v433 = vrot.slane %v432, 1
          %v434 = vadd.f32 %v432, %v433
          %s435 = vtos %v434
          %v436 = vld [vmem:[%s327] sm:$0xff]
          %437 = vadd.xlane.f32.xlu0 %v436
          %v438 = vpop.xlane.xlu0 %437
          %v439 = vrot.slane %v438, 4
          %v440 = vadd.f32 %v438, %v439
          %v441 = vrot.slane %v440, 2
          %v442 = vadd.f32 %v440, %v441
          %v443 = vrot.slane %v442, 1
          %v444 = vadd.f32 %v442, %v443
          %s445 = vtos %v444
          %s446 = smul.f32 %s435, 2.0
          %s447 = sadd.f32 %s446, 1e-05
          %s448 = sadd.f32 %s445, 1e-05
          %v449 = vstv %s448
          %v450 = vrcp.pop %v449
          %s451 = vtos %v450
          %s452 = smul.f32 %s447, %s451
          %s453 = sadd.f32 %s425, %s452
          %v454 = vld [vmem:[%s335] sm:$0xff]
          %455 = vadd.xlane.f32.xlu0 %v454
          %v456 = vpop.xlane.xlu0 %455
          %v457 = vrot.slane %v456, 4
          %v458 = vadd.f32 %v456, %v457
          %v459 = vrot.slane %v458, 2
          %v460 = vadd.f32 %v458, %v459
          %v461 = vrot.slane %v460, 1
          %v462 = vadd.f32 %v460, %v461
          %s463 = vtos %v462
          %v464 = vld [vmem:[%s340] sm:$0xff]
          %465 = vadd.xlane.f32.xlu0 %v464
          %v466 = vpop.xlane.xlu0 %465
          %v467 = vrot.slane %v466, 4
          %v468 = vadd.f32 %v466, %v467
          %v469 = vrot.slane %v468, 2
          %v470 = vadd.f32 %v468, %v469
          %v471 = vrot.slane %v470, 1
          %v472 = vadd.f32 %v470, %v471
          %s473 = vtos %v472
          %s474 = smul.f32 %s463, 2.0
          %s475 = sadd.f32 %s474, 1e-05
          %s476 = sadd.f32 %s473, 1e-05
          %v477 = vstv %s476
          %v478 = vrcp.pop %v477
          %s479 = vtos %v478
          %s480 = smul.f32 %s475, %s479
          %s481 = sadd.f32 %s453, %s480
          %vm482 = vcmp.eq.s32.totalorder %v235, 0
          %vm483 = vcmp.eq.s32.totalorder %v235, 1
          %vm484 = vcmp.eq.s32.totalorder %v235, 2
          %v485 = vstv %s481
          %v486 = vsel %vm484, %v485, 0.0
          %v487 = vstv %s369
          %v488 = vsel %vm483, %v487, %v486
          %v489 = vstv %s359
          %v490 = vsel %vm482, %v489, %v488
          %491 = vst [vmem:[%s216] sm:$0x1] %v490
        $region44: #{tpu_custom_call.1} parent=27 // pred_fallthru
          _
        %s492 = sand.u32 %s98, 1
        %s493 = scalar_lea.sflag [#allocation8], %s492
        %s494 = sand.u32 %s98, 1
        %s495 = scalar_lea.vmem [#allocation11], %s494
        // Predicated region
        $region45: #{tpu_custom_call.1} parent=27 // pred_check
          %p496 = pneg %p108
        $region46: #{tpu_custom_call.1} parent=27 // pred_check_branch
          %498 = sbr.rel (%p496) target = $region48
        $region47: #{tpu_custom_call.1} parent=27 // pred_region
          %s500 = ssub.s32 16, 16
          %501 = vsyncadd %s493, %s500
          %s502 = smul.addr %s26, 16
          %s503 = scalar_lea.hbm %s2, %s502
          %s505 = sshll.u32 %s495, 4
          %s506 = int_to_ptr.vmem [resolvable:$true] %s505
          %508 = dma.vmem_to_hbm [thread:$0]  %s506, 16, %s503, %s493
        $region48: #{tpu_custom_call.1} parent=27 // pred_fallthru
          _
      $region28: #{tpu_custom_call.1} parent=5 // pred_fallthru
        _
      %p509 = scmp.le.s32.totalorder 2, %s17
      // Predicated region
      $region49: #{tpu_custom_call.1} parent=5 // pred_check
        %p510 = pneg %p509
      $region50: #{tpu_custom_call.1} parent=5 // pred_check_branch
        %512 = sbr.rel (%p510) target = $region52
      $region51: #{tpu_custom_call.1} parent=5 // pred_region
        %s513 = ssub.s32 %s17, 2
        // Predicated region
        $region53: #{tpu_custom_call.1} parent=51 // pred_check
          %p514 = pneg %p114
        $region54: #{tpu_custom_call.1} parent=51 // pred_check_branch
          %516 = sbr.rel (%p514) target = $region56
        $region55: #{tpu_custom_call.1} parent=51 // pred_region
          %s517 = sand.u32 %s99, 1
          %s518 = scalar_lea.sflag [#allocation8], %s517
          %s519 = sand.u32 %s99, 1
          %s520 = scalar_lea.vmem [#allocation11], %s519
          %521 = dma.done %s518, 16
        $region56: #{tpu_custom_call.1} parent=51 // pred_fallthru
          _
      $region52: #{tpu_custom_call.1} parent=5 // pred_fallthru
        _
    $region6: #{tpu_custom_call.1} parent=1 // loop_footer
      %s21 = sadd.s32 1, %s17
    $region7: #{tpu_custom_call.1} parent=1 // loop_footer_branch
      %16 = sbr.rel target = $region3
    $region8: #{tpu_custom_call.1} parent=1 // loop_exit
      _
    %522 = vsyncpa [#allocation7], 1
    %s523 = scalar_lea.sflag [#allocation7], 1
    %524 = vsyncpa %s523, 1
    %525 = vsyncpa [#allocation10], 1
    %s526 = scalar_lea.sflag [#allocation10], 1
    %527 = vsyncpa %s526, 1
    %528 = vsyncpa [#allocation8], 1
    %s529 = scalar_lea.sflag [#allocation8], 1
    %530 = vsyncpa %s529, 1

</llo_original>
